<compile_context>
chip_gen: v6e
topology: v6e:2x2x1
jax: 0.10.0
libtpu: 0.0.40
codegen_flags: <defaults>
</compile_context>

<pallas_src>
import functools

import jax
import jax.numpy as jnp
from jax.experimental import pallas as pl
from jax.experimental.pallas import tpu as pltpu

BN_EPS = 1e-5
LANE = 128


def _round_up(x, m):
    return (x + m - 1) // m * m


def _tile_candidates(dim_pad, cap):
    cands = [c for c in (2048, 1024, 512, 256, 128) if c <= cap and dim_pad % c == 0]
    if dim_pad <= cap and dim_pad not in cands:
        cands.append(dim_pad)
    return sorted(set(cands), reverse=True)


def _choose_tiles(B, in_pad, out_pad, budget_bytes=28 * 1024 * 1024):
    """Pick (tn, tk, x_resident) under a conservative VMEM footprint budget."""
    # x stays resident across the whole grid if it is small enough.
    x_resident = (B * in_pad * 2) <= (8 * 1024 * 1024)

    # Prefer >= 2 out-tiles so the "parallel" axis can shard across both
    # TensorCores on v7x (single-tile output is unavoidable for out_pad==128).
    tn_cap = out_pad if out_pad <= 128 else max(128, out_pad // 2)
    tn_cands = _tile_candidates(out_pad, min(tn_cap, 1024))
    tk_cands = _tile_candidates(in_pad, min(in_pad, 2048))

    def footprint(tn, tk):
        x_buf = 2 * B * (in_pad if x_resident else tk) * 2     # bf16, 2 buffers
        w_buf = 2 * tk * tn * 2                                 # bf16 weights
        p_buf = 2 * 3 * tn * 4                                  # packed BN params
        o_buf = 2 * B * tn * 4                                  # f32 output/acc
        return x_buf + w_buf + p_buf + o_buf

    for tn in tn_cands:
        for tk in tk_cands:
            if footprint(tn, tk) <= budget_bytes:
                return tn, tk, x_resident
    # TODO(synk): for very large B x out, tile the batch with a two-pass BN
    # instead of falling back to the smallest tiles.
    return tn_cands[-1], tk_cands[-1], x_resident


# --------------------------------------------------------------------------- #
# Kernel: grid = (out_tiles, k_tiles). Full batch resident per out-tile.
# o_ref block index is constant across k -> it is the accumulator.
# --------------------------------------------------------------------------- #
def gene_layer_kernel(x_ref, wt_ref, bn_ref, o_ref, *, tk, x_resident):
    k = pl.program_id(1)

    if x_resident:
        start = pl.multiple_of(k * tk, LANE)
        xk = x_ref[:, pl.ds(start, tk)]
    else:
        xk = x_ref[...]

    # bf16 x bf16 -> f32 accumulate on the MXU.
    prod = jnp.dot(xk, wt_ref[...], preferred_element_type=jnp.float32)

    @pl.when(k == 0)
    def _():
        o_ref[...] = prod          # no zero-init pass

    @pl.when(k > 0)
    def _():
        o_ref[...] += prod

    @pl.when(k == pl.num_programs(1) - 1)
    def _():
        bn = bn_ref[...]           # (3, tn): bias, gamma, beta
        bias = bn[0:1, :]
        gamma = bn[1:2, :]
        beta = bn[2:3, :]

        # pruned-linear bias + tanh (EUP), all in f32.
        y = jnp.tanh(o_ref[...] + bias)

        # BatchNorm1d, training mode: biased batch stats over the batch axis,
        # computed in one fused pass (sum and sum-of-squares).
        inv_n = 1.0 / y.shape[0]
        s1 = jnp.sum(y, axis=0, keepdims=True)
        s2 = jnp.sum(y * y, axis=0, keepdims=True)
        mean = s1 * inv_n
        var = jnp.maximum(s2 * inv_n - mean * mean, 0.0)

        # Fold affine into one per-channel scale/shift (single FMA-style pass).
        scale = gamma * jax.lax.rsqrt(var + BN_EPS)
        shift = beta - mean * scale
        o_ref[...] = y * scale + shift


# --------------------------------------------------------------------------- #
# One-time parameter preparation (amortized across forward calls).
# --------------------------------------------------------------------------- #
def prepare_gene_layer_params(weight, mask, bias, gamma, beta):
    """weight/mask: (out, in) as in PyTorch; bias/gamma/beta: (out,)."""
    out_size, in_size = weight.shape
    in_pad = _round_up(in_size, LANE)
    out_pad = _round_up(out_size, LANE)

    # Pre-apply the pruning mask, pre-transpose to (in, out), zero-pad to
    # lane-dense shapes, cast the MXU operand to bf16.
    w = (weight.astype(jnp.float32) * mask.astype(jnp.float32)).T     # (in, out)
    wt = jnp.pad(w, ((0, in_pad - in_size), (0, out_pad - out_size)))
    wt = wt.astype(jnp.bfloat16)

    # Pack bias/gamma/beta into one (3, out_pad) f32 array (one DMA per tile).
    # Zero padding keeps padded channels finite (var=0 -> rsqrt(eps)*gamma=0).
    bn = jnp.stack([bias, gamma, beta]).astype(jnp.float32)
    bn = jnp.pad(bn, ((0, 0), (0, out_pad - out_size)))

    return dict(wt=wt, bn=bn, in_size=in_size, out_size=out_size,
                in_pad=in_pad, out_pad=out_pad)


# --------------------------------------------------------------------------- #
# Forward pass.
# --------------------------------------------------------------------------- #
def gene_layer(x, params):
    """x: (B, in_features) -> (B, out_features), PyTorch training-mode BN.

    Notes: matmul operands are bf16 (MXU) with f32 accumulation, so output is
    not bit-exact vs. PyTorch's f32 matmul. BatchNorm1d running-stat momentum
    updates are not produced (training-mode forward normalization only).
    B == 1 yields var = 0 and output == beta (PyTorch raises in that case).
    """
    B, in_size = x.shape
    assert in_size == params["in_size"]
    in_pad, out_pad = params["in_pad"], params["out_pad"]

    # Cast to bf16 first, then zero-pad K in bf16 (no f32 HBM round trip).
    xp = x.astype(jnp.bfloat16)
    if in_pad > in_size:
        xp = jnp.pad(xp, ((0, 0), (0, in_pad - in_size)))

    tn, tk, x_resident = _choose_tiles(B, in_pad, out_pad)
    grid = (out_pad // tn, in_pad // tk)

    if x_resident:
        x_spec = pl.BlockSpec((B, in_pad), lambda n, k: (0, 0))   # one DMA, resident
    else:
        x_spec = pl.BlockSpec((B, tk), lambda n, k: (0, k))       # stream per k

    kernel = functools.partial(gene_layer_kernel, tk=tk, x_resident=x_resident)

    out = pl.pallas_call(
        kernel,
        out_shape=jax.ShapeDtypeStruct((B, out_pad), jnp.float32),
        grid_spec=pltpu.PrefetchScalarGridSpec(
            num_scalar_prefetch=0,
            grid=grid,
            in_specs=[
                x_spec,                                           # x (bf16)
                pl.BlockSpec((tk, tn), lambda n, k: (k, n)),      # pre-masked W^T
                pl.BlockSpec((3, tn), lambda n, k: (0, n)),       # bias/gamma/beta
            ],
            out_specs=pl.BlockSpec((B, tn), lambda n, k: (0, n)),  # accumulator
        ),
        compiler_params=pltpu.CompilerParams(
            # out-tiles are independent (BN is per-channel) -> parallel across
            # TensorCores on v7x; K is the reduction -> arbitrary.
            dimension_semantics=("parallel", "arbitrary"),
            vmem_limit_bytes=48 * 1024 * 1024,
        ),
    )(xp, params["wt"], params["bn"])

    return out[:, :params["out_size"]]


# --------------------------------------------------------------------------- #
# References.
# --------------------------------------------------------------------------- #
def gene_layer_ref_f32(x, weight, mask, bias, gamma, beta):
    """Pure-f32 reference mirroring the PyTorch forward (training-mode BN)."""
    y = x @ (weight * mask).T + bias
    y = jnp.tanh(y)
    mean = jnp.mean(y, axis=0, keepdims=True)
    var = jnp.mean((y - mean) ** 2, axis=0, keepdims=True)
    return (y - mean) / jnp.sqrt(var + BN_EPS) * gamma + beta


def gene_layer_ref_bf16(x, weight, mask, bias, gamma, beta):
    """Same semantics, but matmul operands rounded to bf16 (matches the
    kernel's MXU input precision)."""
    xb = x.astype(jnp.bfloat16).astype(jnp.float32)
    wb = (weight.astype(jnp.float32) * mask.astype(jnp.float32)
          ).astype(jnp.bfloat16).astype(jnp.float32)
    y = xb @ wb.T + bias
    y = jnp.tanh(y)
    mean = jnp.mean(y, axis=0, keepdims=True)
    var = jnp.mean((y - mean) ** 2, axis=0, keepdims=True)
    return (y - mean) / jnp.sqrt(var + BN_EPS) * gamma + beta


if __name__ == "__main__":
    key = jax.random.PRNGKey(0)
    k_x, k_w, k_b, k_m, k_g, k_bt = jax.random.split(key, 6)

    batch, input_size, out_size = 8, 32, 16

    x = jax.random.normal(k_x, (batch, input_size), dtype=jnp.float32)

    # Deterministic parameter init (PyTorch Linear-like uniform range).
    bound = 1.0 / (input_size ** 0.5)
    weight = jax.random.uniform(k_w, (out_size, input_size),
                                minval=-bound, maxval=bound, dtype=jnp.float32)
    bias = jax.random.uniform(k_b, (out_size,),
                              minval=-bound, maxval=bound, dtype=jnp.float32)

    # Deterministic binary pruning mask (~50% kept).
    pruning_mask = (jax.random.uniform(k_m, (out_size, input_size)) > 0.5
                    ).astype(jnp.float32)

    # Non-trivial BatchNorm1d affine params (exercise the scale/shift path).
    gamma = jax.random.uniform(k_g, (out_size,), minval=0.5, maxval=1.5,
                               dtype=jnp.float32)
    beta = 0.1 * jax.random.normal(k_bt, (out_size,), dtype=jnp.float32)

    params = prepare_gene_layer_params(weight, pruning_mask, bias, gamma, beta)
    out = gene_layer(x, params)
    out = jax.block_until_ready(out)
    assert out.shape == (batch, out_size)

    # Tight check vs. a reference using the same bf16 matmul inputs.
    ref_bf16 = gene_layer_ref_bf16(x, weight, pruning_mask, bias, gamma, beta)
    assert jnp.allclose(out, ref_bf16, atol=5e-4, rtol=5e-4), "mismatch vs bf16 ref"

    # Loose check vs. the pure-f32 PyTorch-semantics reference (bf16 MXU inputs).
    ref_f32 = gene_layer_ref_f32(x, weight, pruning_mask, bias, gamma, beta)
    assert jnp.allclose(out, ref_f32, atol=5e-2, rtol=5e-2), "mismatch vs f32 ref"

    print("KERNEL_OK")
</pallas_src>

<mosaic_0001>
module attributes {stable_mosaic.version = 11 : i64} {
  func.func @gene_layer_kernel(%arg0: i32, %arg1: i32, %arg2: memref<8x128xbf16, #tpu.memory_space<vmem>>, %arg3: memref<128x128xbf16, #tpu.memory_space<vmem>>, %arg4: memref<3x128xf32, #tpu.memory_space<vmem>>, %arg5: memref<8x128xf32, #tpu.memory_space<vmem>>) attributes {dimension_semantics = [#tpu.dimension_semantics<parallel>, #tpu.dimension_semantics<arbitrary>], iteration_bounds = array<i64: 1, 1>, scalar_prefetch = 0 : i64, scratch_operands = 0 : i64, tpu.core_type = #tpu.core_type<tc>, window_params = [{pipeline_mode = #tpu.pipeline_mode<synchronous>, transform_indices = @transform_0, window_bounds = array<i64: 8, 128>}, {transform_indices = @transform_1, window_bounds = array<i64: 128, 128>}, {transform_indices = @transform_2, window_bounds = array<i64: 3, 128>}, {transform_indices = @transform_3, window_bounds = array<i64: 8, 128>}]} {
    %c128_i32 = arith.constant 128 : i32
    %0 = arith.muli %arg1, %c128_i32 : i32
    %1 = tpu.assume_multiple %0, 128 : i32
    %c0 = arith.constant 0 : index
    %2 = arith.index_cast %1 : i32 to index
    %3 = vector.load %arg2[%c0, %2] : memref<8x128xbf16, #tpu.memory_space<vmem>>, vector<8x128xbf16>
    %c0_0 = arith.constant 0 : index
    %c0_1 = arith.constant 0 : index
    %4 = vector.load %arg3[%c0_0, %c0_1] : memref<128x128xbf16, #tpu.memory_space<vmem>>, vector<128x128xbf16>
    %cst = arith.constant dense<0.000000e+00> : vector<8x128xf32>
    %5 = tpu.matmul %3, %4, %cst {dimension_numbers = #tpu.dot_dimension_numbers<[1], [0], [0], [1], [0, 0, 1, 1], [], []>} : vector<8x128xbf16>, vector<128x128xbf16>, vector<8x128xf32> -> vector<8x128xf32>
    %c0_i32 = arith.constant 0 : i32
    %6 = arith.cmpi eq, %arg1, %c0_i32 : i32
    %7 = arith.extui %6 : i1 to i32
    %c0_i32_2 = arith.constant 0 : i32
    %8 = arith.cmpi ne, %7, %c0_i32_2 : i32
    scf.if %8 {
      %c0_7 = arith.constant 0 : index
      %c0_8 = arith.constant 0 : index
      %15 = vector.load %arg5[%c0_7, %c0_8] : memref<8x128xf32, #tpu.memory_space<vmem>>, vector<8x128xf32>
      tpu.vector_store %arg5[%c0_7, %c0_8], %5 {strides = array<i32>} : memref<8x128xf32, #tpu.memory_space<vmem>>, vector<8x128xf32>,
    } else {
    }
    %c0_i32_3 = arith.constant 0 : i32
    %9 = arith.cmpi sgt, %arg1, %c0_i32_3 : i32
    %10 = arith.extui %9 : i1 to i32
    %c0_i32_4 = arith.constant 0 : i32
    %11 = arith.cmpi ne, %10, %c0_i32_4 : i32
    scf.if %11 {
      %c0_7 = arith.constant 0 : index
      %c0_8 = arith.constant 0 : index
      %15 = vector.load %arg5[%c0_7, %c0_8] : memref<8x128xf32, #tpu.memory_space<vmem>>, vector<8x128xf32>
      %16 = arith.addf %15, %5 : vector<8x128xf32>
      %c0_9 = arith.constant 0 : index
      %c0_10 = arith.constant 0 : index
      %17 = vector.load %arg5[%c0_9, %c0_10] : memref<8x128xf32, #tpu.memory_space<vmem>>, vector<8x128xf32>
      tpu.vector_store %arg5[%c0_9, %c0_10], %16 {strides = array<i32>} : memref<8x128xf32, #tpu.memory_space<vmem>>, vector<8x128xf32>,
    } else {
    }
    %c0_i32_5 = arith.constant 0 : i32
    %12 = arith.cmpi eq, %arg1, %c0_i32_5 : i32
    %13 = arith.extui %12 : i1 to i32
    %c0_i32_6 = arith.constant 0 : i32
    %14 = arith.cmpi ne, %13, %c0_i32_6 : i32
    scf.if %14 {
      %c0_7 = arith.constant 0 : index
      %c0_8 = arith.constant 0 : index
      %15 = vector.load %arg4[%c0_7, %c0_8] : memref<3x128xf32, #tpu.memory_space<vmem>>, vector<3x128xf32>
      %16 = vector.extract_strided_slice %15 {offsets = [0, 0], sizes = [1, 128], strides = [1, 1]} : vector<3x128xf32> to vector<1x128xf32>
      %17 = vector.extract_strided_slice %15 {offsets = [1, 0], sizes = [1, 128], strides = [1, 1]} : vector<3x128xf32> to vector<1x128xf32>
      %18 = vector.extract_strided_slice %15 {offsets = [2, 0], sizes = [1, 128], strides = [1, 1]} : vector<3x128xf32> to vector<1x128xf32>
      %c0_9 = arith.constant 0 : index
      %c0_10 = arith.constant 0 : index
      %19 = vector.load %arg5[%c0_9, %c0_10] : memref<8x128xf32, #tpu.memory_space<vmem>>, vector<8x128xf32>
      %20 = vector.broadcast %16 : vector<1x128xf32> to vector<8x128xf32>
      %21 = arith.addf %19, %20 : vector<8x128xf32>
      %22 = math.tanh %21 : vector<8x128xf32>
      %cst_11 = arith.constant dense<0.000000e+00> : vector<128xf32>
      %23 = vector.multi_reduction <add>, %22, %cst_11 [0] : vector<8x128xf32> to vector<128xf32>
      %24 = vector.shape_cast %23 : vector<128xf32> to vector<1x128xf32>
      %25 = arith.mulf %22, %22 : vector<8x128xf32>
      %cst_12 = arith.constant dense<0.000000e+00> : vector<128xf32>
      %26 = vector.multi_reduction <add>, %25, %cst_12 [0] : vector<8x128xf32> to vector<128xf32>
      %27 = vector.shape_cast %26 : vector<128xf32> to vector<1x128xf32>
      %cst_13 = arith.constant 1.250000e-01 : f32
      %28 = vector.broadcast %cst_13 : f32 to vector<1x128xf32>
      %29 = arith.mulf %24, %28 : vector<1x128xf32>
      %cst_14 = arith.constant 1.250000e-01 : f32
      %30 = vector.broadcast %cst_14 : f32 to vector<1x128xf32>
      %31 = arith.mulf %27, %30 : vector<1x128xf32>
      %32 = arith.mulf %29, %29 : vector<1x128xf32>
      %33 = arith.subf %31, %32 : vector<1x128xf32>
      %cst_15 = arith.constant 0.000000e+00 : f32
      %34 = vector.broadcast %cst_15 : f32 to vector<1x128xf32>
      %35 = arith.maximumf %33, %34 : vector<1x128xf32>
      %cst_16 = arith.constant 9.99999974E-6 : f32
      %36 = vector.broadcast %cst_16 : f32 to vector<1x128xf32>
      %37 = arith.addf %35, %36 : vector<1x128xf32>
      %38 = math.rsqrt %37 : vector<1x128xf32>
      %39 = arith.mulf %17, %38 : vector<1x128xf32>
      %40 = arith.mulf %29, %39 : vector<1x128xf32>
      %41 = arith.subf %18, %40 : vector<1x128xf32>
      %42 = vector.broadcast %39 : vector<1x128xf32> to vector<8x128xf32>
      %43 = arith.mulf %22, %42 : vector<8x128xf32>
      %44 = vector.broadcast %41 : vector<1x128xf32> to vector<8x128xf32>
      %45 = arith.addf %43, %44 : vector<8x128xf32>
      %c0_17 = arith.constant 0 : index
      %c0_18 = arith.constant 0 : index
      %46 = vector.load %arg5[%c0_17, %c0_18] : memref<8x128xf32, #tpu.memory_space<vmem>>, vector<8x128xf32>
      tpu.vector_store %arg5[%c0_17, %c0_18], %45 {strides = array<i32>} : memref<8x128xf32, #tpu.memory_space<vmem>>, vector<8x128xf32>,
    } else {
    }
    return
  }
  func.func @transform_0(%arg0: i32, %arg1: i32) -> (i32, i32) {
    %c0_i32 = arith.constant 0 : i32
    %c0_i32_0 = arith.constant 0 : i32
    %c0_i32_1 = arith.constant 0 : i32
    return %c0_i32, %c0_i32_0 : i32, i32
  }
  func.func @transform_1(%arg0: i32, %arg1: i32) -> (i32, i32) {
    %c0_i32 = arith.constant 0 : i32
    return %arg1, %arg0 : i32, i32
  }
  func.func @transform_2(%arg0: i32, %arg1: i32) -> (i32, i32) {
    %c0_i32 = arith.constant 0 : i32
    %c0_i32_0 = arith.constant 0 : i32
    return %c0_i32, %arg0 : i32, i32
  }
  func.func @transform_3(%arg0: i32, %arg1: i32) -> (i32, i32) {
    %c0_i32 = arith.constant 0 : i32
    %c0_i32_0 = arith.constant 0 : i32
    return %c0_i32, %arg0 : i32, i32
  }
}

</mosaic_0001>

<llo_original>
// kernel: tpu_custom_call.1
$region0: #{tpu_custom_call.1}
  #allocation0 [shape = 'u32[]', space=smem, size = 0x4, offset = 0x4, fixed_abs, tag = 'smem constant byte address 0x4 - core index']
  #allocation1 [shape = 'u32[144,128]{1,0:T(1,128)}', space=vmem, size = 0x12000, scoped, tag = 'internal scratch']
  %s0 = inlined_call_operand.hbm [shape: bf16[8,128], index: 0, kind: input, shape index: {}]
  %s1 = inlined_call_operand.hbm [shape: bf16[128,128], index: 1, kind: input, shape index: {}]
  %s2 = inlined_call_operand.hbm [shape: f32[3,128], index: 2, kind: input, shape index: {}]
  %s3 = inlined_call_operand.hbm [shape: f32[8,128], index: 3, kind: output, shape index: {}]
  %s4 = sld [smem:[#allocation0]]
  $region46: #{tpu_custom_call.1} parent=0
    _
  %s6 = ssub.s32 1, %s4
  %s7 = scalar_select 0, %s6, %s4
  $region1: #{tpu_custom_call.1} parent=0
    #allocation2 [shape = 'u8[2048]{0}', space=vmem, size = 0x800, scoped, tag = 'input window, operand 0, single buffered']
    #allocation3 [shape = 's32[1]{0}', space=sflag, size = 0x4, scoped, tag = 'scoped memory for tpu_custom_call.1']
    #allocation4 [shape = 's32[1]{0}', space=sflag, size = 0x4, scoped, tag = 'scoped memory for tpu_custom_call.1']
    #allocation5 [shape = 'u8[32768]{0}', space=vmem, size = 0x8000, scoped, tag = 'input window, operand 1, single buffered']
    #allocation6 [shape = 's32[1]{0}', space=sflag, size = 0x4, scoped, tag = 'scoped memory for tpu_custom_call.1']
    #allocation7 [shape = 'u8[2048]{0}', space=vmem, size = 0x800, scoped, tag = 'input window, operand 2, single buffered']
    #allocation8 [shape = 'u8[4096]{0}', space=vmem, size = 0x1000, scoped, tag = 'output window, operand 0, single buffered']
    %8 = vsyncpa [#allocation3], 0
    %9 = vsyncpa [#allocation6], 0
    %10 = vsyncpa [#allocation4], 0
    // Predicated region
    $region2: #{tpu_custom_call.1} parent=1 // pred_check
      _
    $region3: #{tpu_custom_call.1} parent=1 // pred_check_branch
      %12 = sbr.rel (0) target = $region5
    $region4: #{tpu_custom_call.1} parent=1 // pred_region
      %s14 = ssub.s32 64, 64
      %15 = vsyncadd [#allocation3], %s14
      %s17 = sshll.u32 [#allocation2], 4
      %s18 = int_to_ptr.vmem [resolvable:$true] %s17
      %20 = dma.hbm_to_vmem [thread:$0]  %s0, 64, %s18, [#allocation3]
    $region5: #{tpu_custom_call.1} parent=1 // pred_fallthru
      _
    // Predicated region
    $region6: #{tpu_custom_call.1} parent=1 // pred_check
      _
    $region7: #{tpu_custom_call.1} parent=1 // pred_check_branch
      %22 = sbr.rel (0) target = $region9
    $region8: #{tpu_custom_call.1} parent=1 // pred_region
      %s24 = ssub.s32 1024, 1024
      %25 = vsyncadd [#allocation6], %s24
      %s26 = sshll.u32 [#allocation5], 4
      %s27 = int_to_ptr.vmem [resolvable:$true] %s26
      %32 = dma.hbm_to_vmem [thread:$0]  %s1, 1024, %s27, [#allocation6], 64, 64, 4
    $region9: #{tpu_custom_call.1} parent=1 // pred_fallthru
      _
    // Predicated region
    $region10: #{tpu_custom_call.1} parent=1 // pred_check
      _
    $region11: #{tpu_custom_call.1} parent=1 // pred_check_branch
      %34 = sbr.rel (0) target = $region13
    $region12: #{tpu_custom_call.1} parent=1 // pred_region
      %s36 = ssub.s32 64, 64
      %37 = vsyncadd [#allocation6], %s36
      %s39 = sshll.u32 [#allocation7], 4
      %s40 = int_to_ptr.vmem [resolvable:$true] %s39
      %42 = dma.hbm_to_vmem [thread:$0]  %s2, 64, %s40, [#allocation6]
    $region13: #{tpu_custom_call.1} parent=1 // pred_fallthru
      _
    // Predicated region
    $region14: #{tpu_custom_call.1} parent=1 // pred_check
      _
    $region15: #{tpu_custom_call.1} parent=1 // pred_check_branch
      %44 = sbr.rel (0) target = $region17
    $region16: #{tpu_custom_call.1} parent=1 // pred_region
      %45 = dma.done [#allocation3], 64
    $region17: #{tpu_custom_call.1} parent=1 // pred_fallthru
      _
    // Predicated region
    $region18: #{tpu_custom_call.1} parent=1 // pred_check
      _
    $region19: #{tpu_custom_call.1} parent=1 // pred_check_branch
      %47 = sbr.rel (0) target = $region21
    $region20: #{tpu_custom_call.1} parent=1 // pred_region
      %48 = dma.done [#allocation6], 1024
    $region21: #{tpu_custom_call.1} parent=1 // pred_fallthru
      _
    // Predicated region
    $region22: #{tpu_custom_call.1} parent=1 // pred_check
      _
    $region23: #{tpu_custom_call.1} parent=1 // pred_check_branch
      %50 = sbr.rel (0) target = $region25
    $region24: #{tpu_custom_call.1} parent=1 // pred_region
      %51 = dma.done [#allocation6], 64
    $region25: #{tpu_custom_call.1} parent=1 // pred_fallthru
      _
    %s53 = smul.u32 0, 128
    %s54 = sshra.s32 %s53, 7
    %s55 = sand.u32 %s53, 127
    %s56 = smul.addr %s54, 4
    %s57 = scalar_lea.vmem [#allocation2], %s56
    %v58 = vld [vmem:[%s57] sm:$0xf]
    %v59 = vld [vmem:[#allocation5] sm:$0xf]
    %v60 = vld [vmem:[#allocation5 + $0x4] sm:$0xf]
    %v61 = vld [vmem:[#allocation5 + $0x8] sm:$0xf]
    %v62 = vld [vmem:[#allocation5 + $0xc] sm:$0xf]
    %v63 = vld [vmem:[#allocation5 + $0x10] sm:$0xf]
    %v64 = vld [vmem:[#allocation5 + $0x14] sm:$0xf]
    %v65 = vld [vmem:[#allocation5 + $0x18] sm:$0xf]
    %v66 = vld [vmem:[#allocation5 + $0x1c] sm:$0xf]
    %v67 = vld [vmem:[#allocation5 + $0x20] sm:$0xf]
    %v68 = vld [vmem:[#allocation5 + $0x24] sm:$0xf]
    %v69 = vld [vmem:[#allocation5 + $0x28] sm:$0xf]
    %v70 = vld [vmem:[#allocation5 + $0x2c] sm:$0xf]
    %v71 = vld [vmem:[#allocation5 + $0x30] sm:$0xf]
    %v72 = vld [vmem:[#allocation5 + $0x34] sm:$0xf]
    %v73 = vld [vmem:[#allocation5 + $0x38] sm:$0xf]
    %v74 = vld [vmem:[#allocation5 + $0x3c] sm:$0xf]
    %v91 = vunpack.c.l.b16 %v59
    %v92 = vunpack.c.l.b16 %v60
    %v93 = vunpack.c.l.b16 %v61
    %v94 = vunpack.c.l.b16 %v62
    %v95 = vunpack.c.l.b16 %v63
    %v96 = vunpack.c.l.b16 %v64
    %v97 = vunpack.c.l.b16 %v65
    %v98 = vunpack.c.l.b16 %v66
    %v99 = vunpack.c.l.b16 %v67
    %v100 = vunpack.c.l.b16 %v68
    %v101 = vunpack.c.l.b16 %v69
    %v102 = vunpack.c.l.b16 %v70
    %v103 = vunpack.c.l.b16 %v71
    %v104 = vunpack.c.l.b16 %v72
    %v105 = vunpack.c.l.b16 %v73
    %v106 = vunpack.c.l.b16 %v74
    %v107 = vpack.c.b16 %v92, %v91
    %v108 = vpack.c.b16 %v94, %v93
    %v109 = vpack.c.b16 %v96, %v95
    %v110 = vpack.c.b16 %v98, %v97
    %v111 = vpack.c.b16 %v100, %v99
    %v112 = vpack.c.b16 %v102, %v101
    %v113 = vpack.c.b16 %v104, %v103
    %v114 = vpack.c.b16 %v106, %v105
    %123 = vmatprep.subr.bf16.mxu0 0
    %124 = vmatpush1.bf16.msra.mxu0 %v114
    %125 = vmatprep.subr.bf16.mxu0 0
    %126 = vmatpush1.bf16.msra.mxu0 %v113
    %127 = vmatprep.subr.bf16.mxu0 0
    %128 = vmatpush1.bf16.msra.mxu0 %v112
    %129 = vmatprep.subr.bf16.mxu0 0
    %130 = vmatpush1.bf16.msra.mxu0 %v111
    %131 = vmatprep.subr.bf16.mxu0 0
    %132 = vmatpush1.bf16.msra.mxu0 %v110
    %133 = vmatprep.subr.bf16.mxu0 0
    %134 = vmatpush1.bf16.msra.mxu0 %v109
    %135 = vmatprep.subr.bf16.mxu0 0
    %136 = vmatpush1.bf16.msra.mxu0 %v108
    %137 = vmatprep.subr.bf16.mxu0 0
    %138 = vmatpush1.bf16.msra.mxu0 %v107
    %139 = vmatprep.subr.bf16.mxu0 0
    %140 = vmatpush2.bf16.msra.mxu0 0
    %141 = vmatprep.subr.bf16.mxu0 0
    %142 = vmatpush2.bf16.msra.mxu0 0
    %143 = vmatprep.subr.bf16.mxu0 0
    %144 = vmatpush2.bf16.msra.mxu0 0
    %145 = vmatprep.subr.bf16.mxu0 0
    %146 = vmatpush2.bf16.msra.mxu0 0
    %147 = vmatprep.subr.bf16.mxu0 0
    %148 = vmatpush2.bf16.msra.mxu0 0
    %149 = vmatprep.subr.bf16.mxu0 0
    %150 = vmatpush2.bf16.msra.mxu0 0
    %151 = vmatprep.subr.bf16.mxu0 0
    %152 = vmatpush2.bf16.msra.mxu0 0
    %153 = vmatprep.subr.bf16.mxu0 0
    %154 = vmatpush2.bf16.msra.mxu0 0
    %155 = vmatprep.mubr.bf16.mxu0 0
    %156 = vmatmul.mubr.bf16.gmra.mxu0 %v58
    %v157 = vpop.f32.mrf.mxu0
    %v158 = vadd.f32 0.0, %v157
    %v159 = vpop.f32.mrf.mxu0
    %v160 = vpop.f32.mrf.mxu0
    %v161 = vpop.f32.mrf.mxu0
    %162 = vdwg.mxu0
    %p163 = scmp.eq.s32.totalorder 0, 0
    // Predicated region
    $region26: #{tpu_custom_call.1} parent=1 // pred_check
      %p164 = pneg %p163
    $region27: #{tpu_custom_call.1} parent=1 // pred_check_branch
      %166 = sbr.rel (%p164) target = $region29
    $region28: #{tpu_custom_call.1} parent=1 // pred_region
      %167 = vst [vmem:[#allocation8] sm:$0xff] %v158
    $region29: #{tpu_custom_call.1} parent=1 // pred_fallthru
      _
    %p168 = scmp.gt.s32.totalorder 0, 0
    // Predicated region
    $region30: #{tpu_custom_call.1} parent=1 // pred_check
      %p169 = pneg %p168
    $region31: #{tpu_custom_call.1} parent=1 // pred_check_branch
      %171 = sbr.rel (%p169) target = $region33
    $region32: #{tpu_custom_call.1} parent=1 // pred_region
      %v172 = vld [vmem:[#allocation8] sm:$0xff]
      %v173 = vadd.f32 %v172, %v158
      %174 = vst [vmem:[#allocation8] sm:$0xff] %v173
    $region33: #{tpu_custom_call.1} parent=1 // pred_fallthru
      _
    // Predicated region
    $region34: #{tpu_custom_call.1} parent=1 // pred_check
      %p175 = pneg %p163
    $region35: #{tpu_custom_call.1} parent=1 // pred_check_branch
      %177 = sbr.rel (%p175) target = $region37
    $region36: #{tpu_custom_call.1} parent=1 // pred_region
      %v178 = vld [vmem:[#allocation7] sm:$0x7]
      %v179 = vld [vmem:[#allocation8] sm:$0xff]
      %v180 = vlaneseq
      %v181 = vshrl.u32 %v180, 7
      %v182 = vsub.s32 0, %v181
      %v183 = vrot.slane %v178, %v182
      %v184 = vadd.f32 %v179, %v183
      %v185 = vtanh.pop %v184
      %v186 = vrot.slane %v185, 4
      %v187 = vadd.f32 %v185, %v186
      %v188 = vrot.slane %v187, 2
      %v189 = vadd.f32 %v187, %v188
      %v190 = vrot.slane %v189, 1
      %v191 = vadd.f32 %v189, %v190
      %v192 = vmul.f32 %v185, %v185
      %v193 = vrot.slane %v192, 4
      %v194 = vadd.f32 %v192, %v193
      %v195 = vrot.slane %v194, 2
      %v196 = vadd.f32 %v194, %v195
      %v197 = vrot.slane %v196, 1
      %v198 = vadd.f32 %v196, %v197
      %v199 = vmul.f32 %v191, 0.125
      %v200 = vmul.f32 %v198, 0.125
      %v201 = vmul.f32 %v199, %v199
      %v202 = vsub.f32 %v200, %v201
      %v203 = vmax.f32 %v202, 0.0
      %v204 = vadd.f32 %v203, 1e-05
      %v205 = vrsqrt.pop %v204
      %v206 = vmul.f32 %v178, %v205
      %v207 = vmul.f32 %v199, %v206
      %v209 = vrot.slane %v207, 7
      %v211 = vsub.f32 %v178, %v209
      %v212 = vlaneseq
      %v213 = vshrl.u32 %v212, 7
      %v214 = vsub.s32 1, %v213
      %v215 = vrot.slane %v206, %v214
      %v216 = vmul.f32 %v185, %v215
      %v217 = vlaneseq
      %v218 = vshrl.u32 %v217, 7
      %v219 = vsub.s32 2, %v218
      %v220 = vrot.slane %v211, %v219
      %v221 = vadd.f32 %v216, %v220
      %222 = vst [vmem:[#allocation8] sm:$0xff] %v221
    $region37: #{tpu_custom_call.1} parent=1 // pred_fallthru
      _
    // Predicated region
    $region38: #{tpu_custom_call.1} parent=1 // pred_check
      _
    $region39: #{tpu_custom_call.1} parent=1 // pred_check_branch
      %224 = sbr.rel (0) target = $region41
    $region40: #{tpu_custom_call.1} parent=1 // pred_region
      %s226 = ssub.s32 128, 128
      %227 = vsyncadd [#allocation4], %s226
      %s229 = sshll.u32 [#allocation8], 4
      %s230 = int_to_ptr.vmem [resolvable:$true] %s229
      %232 = dma.vmem_to_hbm [thread:$0]  %s230, 128, %s3, [#allocation4]
    $region41: #{tpu_custom_call.1} parent=1 // pred_fallthru
      _
    // Predicated region
    $region42: #{tpu_custom_call.1} parent=1 // pred_check
      _
    $region43: #{tpu_custom_call.1} parent=1 // pred_check_branch
      %234 = sbr.rel (0) target = $region45
    $region44: #{tpu_custom_call.1} parent=1 // pred_region
      %235 = dma.done [#allocation4], 128
    $region45: #{tpu_custom_call.1} parent=1 // pred_fallthru
      _
    %236 = vsyncpa [#allocation3], 1
    %237 = vsyncpa [#allocation6], 1
    %238 = vsyncpa [#allocation4], 1

</llo_original>
